<compile_context>
chip_gen: v5e
topology: v5e:2x2
jax: 0.10.0
libtpu: 0.0.40
codegen_flags: <defaults>
</compile_context>

<pallas_src>
import functools

import jax
import jax.numpy as jnp
from jax.experimental import pallas as pl
from jax.experimental.pallas import tpu as pltpu


_LANE = 128
_SUBLANE = 8


def _round_up(x, m):
    return (x + m - 1) // m * m


def _pad2d(w, rows, cols):
    r, c = w.shape
    return jnp.pad(w, ((0, rows - r), (0, cols - c)))


def prepare_lassonet_params(w_skip, layer_weights, compute_dtype=jnp.bfloat16):
    """One-time weight prep (do this at init, NOT per forward call).

    - transpose PyTorch (out, in) weights to (in, out)
    - cast to `compute_dtype` (bf16 default: MXU-native on all generations)
    - zero-pad internal feature dims to multiples of 128 (padded lanes are
      inert: extra activation columns are relu(0)=0 and extra weight rows are 0)
    - the FIRST contraction dim (the raw input features) is left unpadded so
      the activation `x` never needs a per-call pad/copy.
    """
    num_layers = len(layer_weights)
    assert num_layers >= 2, "LassoNet requires len(dims) > 2"

    in_dim = layer_weights[0].shape[1]
    out_dim = layer_weights[-1].shape[0]
    assert w_skip.shape == (out_dim, in_dim)

    p_out = _round_up(out_dim, _LANE)

    # hidden layers 0 .. L-2 (the ones followed by ReLU), as (in, out)
    hidden = []
    prev_rows = in_dim                      # first contraction dim stays unpadded
    for w in layer_weights[:-1]:
        o, _ = w.shape
        cols = _round_up(o, _LANE)
        wt = jnp.transpose(w).astype(compute_dtype)
        hidden.append(_pad2d(wt, prev_rows, cols))
        prev_rows = cols                    # next layer contracts over padded width

    # tail pieces (kept separate: out = x @ Wskip_t + h @ Wlast_t, no concat)
    w_skip_t = _pad2d(jnp.transpose(w_skip).astype(compute_dtype), in_dim, p_out)
    w_last_t = _pad2d(jnp.transpose(layer_weights[-1]).astype(compute_dtype),
                      prev_rows, p_out)

    return dict(hidden=tuple(hidden), w_skip_t=w_skip_t, w_last_t=w_last_t,
                in_dim=in_dim, out_dim=out_dim, p_out=p_out,
                compute_dtype=jnp.dtype(compute_dtype))


def _lassonet_kernel(num_hidden, compute_dtype, x_ref, *rest):
    # rest = (w_hidden_0, ..., w_hidden_{H-1}, w_skip_ref, w_last_ref, out_ref)
    w_hidden = rest[:num_hidden]
    w_skip_ref = rest[num_hidden]
    w_last_ref = rest[num_hidden + 1]
    out_ref = rest[num_hidden + 2]

    # cast the tile in-VMEM (bf16 feed to the MXU); accumulate in f32 everywhere
    x = x_ref[...].astype(compute_dtype)

    h = x
    for i in range(num_hidden):
        acc = jnp.dot(h, w_hidden[i][...], preferred_element_type=jnp.float32)
        h = jnp.maximum(acc, 0.0).astype(compute_dtype)   # ReLU epilogue stays f32

    # fused tail, split contraction: skip-dot + last-dot summed in one f32 acc
    out = jnp.dot(x, w_skip_ref[...], preferred_element_type=jnp.float32)
    out = out + jnp.dot(h, w_last_ref[...], preferred_element_type=jnp.float32)
    out_ref[...] = out.astype(out_ref.dtype)


def _vmem_capacity_bytes():
    try:
        info = pltpu.get_tpu_info()
        for attr in ("vmem_capacity_bytes", "vmem_bytes"):
            v = getattr(info, attr, None)
            if v:
                return int(v)
    except Exception:
        pass
    return 64 * 2**20   # conservative (v7x-sized) fallback


def lassonet_forward(x, params, *, block_m=2048):
    """x: (batch, dims[0]); params: output of prepare_lassonet_params."""
    batch, in_dim = x.shape
    assert in_dim == params["in_dim"]
    p_out = params["p_out"]
    hidden = params["hidden"]
    w_skip_t = params["w_skip_t"]
    w_last_t = params["w_last_t"]
    compute_dtype = params["compute_dtype"]
    num_hidden = len(hidden)

    # --- generation-aware VMEM budget & batch-tile sizing -------------------
    vmem_cap = _vmem_capacity_bytes()
    budget = (vmem_cap * 3) // 4            # ~96 MiB on v5e/v6e, ~48 MiB on v7x

    all_weights = (*hidden, w_skip_t, w_last_t)
    w_bytes = 2 * sum(int(w.size) * int(w.dtype.itemsize) for w in all_weights)

    x_item = int(jnp.dtype(x.dtype).itemsize)
    c_item = int(compute_dtype.itemsize)
    widths = [int(w.shape[1]) for w in all_weights] + [in_dim]
    max_w = max(widths)
    per_row = (2 * in_dim * x_item          # x tile, double-buffered
               + 2 * p_out * x_item         # out tile, double-buffered
               + 2 * max_w * 4              # live f32 accumulators / casts
               + in_dim * c_item)           # compute-dtype copy of x for the tail

    avail = max(budget - w_bytes, per_row * _SUBLANE)
    tm = min(block_m, _round_up(batch, _SUBLANE), avail // per_row)
    tm = max(_SUBLANE, (tm // _SUBLANE) * _SUBLANE)

    # guarantee >= 2 grid steps when the batch allows (v7x megacore split)
    if pl.cdiv(batch, tm) < 2 and batch > 2 * _SUBLANE:
        tm = _round_up(pl.cdiv(batch, 2), _SUBLANE)

    grid = (pl.cdiv(batch, tm),)

    # never hand the compiler a limit below what the chosen tile needs
    need = w_bytes + tm * per_row
    vmem_limit = min(max(need + (4 << 20), 16 << 20), budget)
    vmem_limit = int(min(max(vmem_limit, need), vmem_cap))

    # --- specs ---------------------------------------------------------------
    def _const_spec(w):                      # weights: resident across grid steps
        return pl.BlockSpec(w.shape, lambda i: (0, 0))

    in_specs = ([pl.BlockSpec((tm, in_dim), lambda i: (i, 0))]   # x: no per-call pad
                + [_const_spec(w) for w in hidden]
                + [_const_spec(w_skip_t), _const_spec(w_last_t)])
    out_specs = pl.BlockSpec((tm, p_out), lambda i: (i, 0))      # lane-dense stores

    out_padded = pl.pallas_call(
        functools.partial(_lassonet_kernel, num_hidden, compute_dtype),
        out_shape=jax.ShapeDtypeStruct((batch, p_out), x.dtype),
        grid=grid,
        in_specs=in_specs,
        out_specs=out_specs,
        compiler_params=pltpu.CompilerParams(
            dimension_semantics=("parallel",),   # v7x: shard batch tiles over 2 TCs
            vmem_limit_bytes=vmem_limit),
    )(x, *hidden, w_skip_t, w_last_t)

    return out_padded[:, :params["out_dim"]]


def _reference_forward(x, w_skip, layer_weights):
    result = x @ w_skip.T
    h = x
    for i, w in enumerate(layer_weights):
        h = h @ w.T
        if i != len(layer_weights) - 1:
            h = jnp.maximum(h, 0.0)
    return result + h


if __name__ == "__main__":
    # dims = (input, hidden1, hidden2, output)  -> len(dims) > 2 as required
    dims = (16, 32, 32, 8)
    batch = 8

    key = jax.random.PRNGKey(0)
    keys = jax.random.split(key, 2 + len(dims) - 1)

    x = jax.random.normal(keys[0], (batch, dims[0]), dtype=jnp.float32)

    # skip: Linear(dims[0], dims[-1], bias=False) -> weight shape (out, in)
    w_skip = jax.random.normal(keys[1], (dims[-1], dims[0]), dtype=jnp.float32) * 0.1

    # layers[i]: Linear(dims[i], dims[i+1], bias=False) -> weight shape (out, in)
    layer_weights = [
        jax.random.normal(keys[2 + i], (dims[i + 1], dims[i]), dtype=jnp.float32) * 0.1
        for i in range(len(dims) - 1)
    ]

    ref = _reference_forward(x, w_skip, layer_weights)

    # 1) exact-path check: f32 compute dtype, tight tolerance (verifies kernel logic)
    params_f32 = prepare_lassonet_params(w_skip, layer_weights,
                                         compute_dtype=jnp.float32)
    out_f32 = jax.block_until_ready(lassonet_forward(x, params_f32))
    assert out_f32.shape == (batch, dims[-1])
    assert jnp.allclose(out_f32, ref, atol=1e-4, rtol=1e-4), "f32 mismatch vs reference"

    # 2) default bf16 MXU path (weights prepared once, loose tolerance)
    params_bf16 = prepare_lassonet_params(w_skip, layer_weights)
    out_bf16 = jax.block_until_ready(lassonet_forward(x, params_bf16))
    assert out_bf16.shape == (batch, dims[-1])
    assert jnp.allclose(out_bf16, ref, atol=5e-2, rtol=5e-2), "bf16 mismatch vs reference"

    print("KERNEL_OK")
</pallas_src>

<mosaic_0001>
module attributes {stable_mosaic.version = 11 : i64} {
  func.func @_lassonet_kernel(%arg0: i32, %arg1: memref<8x16xf32, #tpu.memory_space<vmem>>, %arg2: memref<16x128xf32, #tpu.memory_space<vmem>>, %arg3: memref<128x128xf32, #tpu.memory_space<vmem>>, %arg4: memref<16x128xf32, #tpu.memory_space<vmem>>, %arg5: memref<128x128xf32, #tpu.memory_space<vmem>>, %arg6: memref<8x128xf32, #tpu.memory_space<vmem>>) attributes {dimension_semantics = [#tpu.dimension_semantics<parallel>], iteration_bounds = array<i64: 1>, scalar_prefetch = 0 : i64, scratch_operands = 0 : i64, tpu.core_type = #tpu.core_type<tc>, window_params = [{transform_indices = @transform_0, window_bounds = array<i64: 8, 16>}, {pipeline_mode = #tpu.pipeline_mode<synchronous>, transform_indices = @transform_1, window_bounds = array<i64: 16, 128>}, {pipeline_mode = #tpu.pipeline_mode<synchronous>, transform_indices = @transform_2, window_bounds = array<i64: 128, 128>}, {pipeline_mode = #tpu.pipeline_mode<synchronous>, transform_indices = @transform_3, window_bounds = array<i64: 16, 128>}, {pipeline_mode = #tpu.pipeline_mode<synchronous>, transform_indices = @transform_4, window_bounds = array<i64: 128, 128>}, {transform_indices = @transform_5, window_bounds = array<i64: 8, 128>}]} {
    %c0 = arith.constant 0 : index
    %c0_0 = arith.constant 0 : index
    %0 = vector.load %arg1[%c0, %c0_0] : memref<8x16xf32, #tpu.memory_space<vmem>>, vector<8x16xf32>
    %c0_1 = arith.constant 0 : index
    %c0_2 = arith.constant 0 : index
    %1 = vector.load %arg2[%c0_1, %c0_2] : memref<16x128xf32, #tpu.memory_space<vmem>>, vector<16x128xf32>
    %cst = arith.constant dense<0.000000e+00> : vector<8x128xf32>
    %2 = tpu.matmul %0, %1, %cst {dimension_numbers = #tpu.dot_dimension_numbers<[1], [0], [0], [1], [0, 0, 1, 1], [], []>} : vector<8x16xf32>, vector<16x128xf32>, vector<8x128xf32> -> vector<8x128xf32>
    %cst_3 = arith.constant 0.000000e+00 : f32
    %3 = vector.broadcast %cst_3 : f32 to vector<8x128xf32>
    %4 = arith.maximumf %2, %3 : vector<8x128xf32>
    %c0_4 = arith.constant 0 : index
    %c0_5 = arith.constant 0 : index
    %5 = vector.load %arg3[%c0_4, %c0_5] : memref<128x128xf32, #tpu.memory_space<vmem>>, vector<128x128xf32>
    %cst_6 = arith.constant dense<0.000000e+00> : vector<8x128xf32>
    %6 = tpu.matmul %4, %5, %cst_6 {dimension_numbers = #tpu.dot_dimension_numbers<[1], [0], [0], [1], [0, 0, 1, 1], [], []>} : vector<8x128xf32>, vector<128x128xf32>, vector<8x128xf32> -> vector<8x128xf32>
    %cst_7 = arith.constant 0.000000e+00 : f32
    %7 = vector.broadcast %cst_7 : f32 to vector<8x128xf32>
    %8 = arith.maximumf %6, %7 : vector<8x128xf32>
    %c0_8 = arith.constant 0 : index
    %c0_9 = arith.constant 0 : index
    %9 = vector.load %arg4[%c0_8, %c0_9] : memref<16x128xf32, #tpu.memory_space<vmem>>, vector<16x128xf32>
    %cst_10 = arith.constant dense<0.000000e+00> : vector<8x128xf32>
    %10 = tpu.matmul %0, %9, %cst_10 {dimension_numbers = #tpu.dot_dimension_numbers<[1], [0], [0], [1], [0, 0, 1, 1], [], []>} : vector<8x16xf32>, vector<16x128xf32>, vector<8x128xf32> -> vector<8x128xf32>
    %c0_11 = arith.constant 0 : index
    %c0_12 = arith.constant 0 : index
    %11 = vector.load %arg5[%c0_11, %c0_12] : memref<128x128xf32, #tpu.memory_space<vmem>>, vector<128x128xf32>
    %cst_13 = arith.constant dense<0.000000e+00> : vector<8x128xf32>
    %12 = tpu.matmul %8, %11, %cst_13 {dimension_numbers = #tpu.dot_dimension_numbers<[1], [0], [0], [1], [0, 0, 1, 1], [], []>} : vector<8x128xf32>, vector<128x128xf32>, vector<8x128xf32> -> vector<8x128xf32>
    %13 = arith.addf %10, %12 : vector<8x128xf32>
    %c0_14 = arith.constant 0 : index
    %c0_15 = arith.constant 0 : index
    %14 = vector.load %arg6[%c0_14, %c0_15] : memref<8x128xf32, #tpu.memory_space<vmem>>, vector<8x128xf32>
    tpu.vector_store %arg6[%c0_14, %c0_15], %13 {strides = array<i32>} : memref<8x128xf32, #tpu.memory_space<vmem>>, vector<8x128xf32>,
    return
  }
  func.func @transform_0(%arg0: i32) -> (i32, i32) {
    %c0_i32 = arith.constant 0 : i32
    %c0_i32_0 = arith.constant 0 : i32
    return %arg0, %c0_i32 : i32, i32
  }
  func.func @transform_1(%arg0: i32) -> (i32, i32) {
    %c0_i32 = arith.constant 0 : i32
    %c0_i32_0 = arith.constant 0 : i32
    %c0_i32_1 = arith.constant 0 : i32
    return %c0_i32, %c0_i32_0 : i32, i32
  }
  func.func @transform_2(%arg0: i32) -> (i32, i32) {
    %c0_i32 = arith.constant 0 : i32
    %c0_i32_0 = arith.constant 0 : i32
    %c0_i32_1 = arith.constant 0 : i32
    return %c0_i32, %c0_i32_0 : i32, i32
  }
  func.func @transform_3(%arg0: i32) -> (i32, i32) {
    %c0_i32 = arith.constant 0 : i32
    %c0_i32_0 = arith.constant 0 : i32
    %c0_i32_1 = arith.constant 0 : i32
    return %c0_i32, %c0_i32_0 : i32, i32
  }
  func.func @transform_4(%arg0: i32) -> (i32, i32) {
    %c0_i32 = arith.constant 0 : i32
    %c0_i32_0 = arith.constant 0 : i32
    %c0_i32_1 = arith.constant 0 : i32
    return %c0_i32, %c0_i32_0 : i32, i32
  }
  func.func @transform_5(%arg0: i32) -> (i32, i32) {
    %c0_i32 = arith.constant 0 : i32
    %c0_i32_0 = arith.constant 0 : i32
    return %arg0, %c0_i32 : i32, i32
  }
}

</mosaic_0001>

<llo_original>
// kernel: tpu_custom_call.1
$region0: #{tpu_custom_call.1}
  #allocation0 [shape = 'u32[]', space=smem, size = 0x4, offset = 0x4, fixed_abs, tag = 'smem constant byte address 0x4 - core index']
  #allocation1 [shape = 'u32[72,128]{1,0:T(1,128)}', space=vmem, size = 0x9000, scoped, tag = 'internal scratch']
  %s0 = inlined_call_operand.hbm [shape: f32[8,16], index: 0, kind: input, shape index: {}]
  %s1 = inlined_call_operand.hbm [shape: f32[16,128], index: 1, kind: input, shape index: {}]
  %s2 = inlined_call_operand.hbm [shape: f32[128,128], index: 2, kind: input, shape index: {}]
  %s3 = inlined_call_operand.hbm [shape: f32[16,128], index: 3, kind: input, shape index: {}]
  %s4 = inlined_call_operand.hbm [shape: f32[128,128], index: 4, kind: input, shape index: {}]
  %s5 = inlined_call_operand.hbm [shape: f32[8,128], index: 5, kind: output, shape index: {}]
  %s6 = sld [smem:[#allocation0]]
  $region50: #{tpu_custom_call.1} parent=0
    _
  %s8 = ssub.s32 1, %s6
  %s9 = scalar_select 0, %s8, %s6
  $region1: #{tpu_custom_call.1} parent=0
    #allocation2 [shape = 'u8[4096]{0}', space=vmem, size = 0x1000, scoped, tag = 'input window, operand 0, single buffered']
    #allocation3 [shape = 's32[1]{0}', space=sflag, size = 0x4, scoped, tag = 'scoped memory for tpu_custom_call.1']
    #allocation4 [shape = 's32[1]{0}', space=sflag, size = 0x4, scoped, tag = 'scoped memory for tpu_custom_call.1']
    #allocation5 [shape = 'u8[8192]{0}', space=vmem, size = 0x2000, scoped, tag = 'input window, operand 1, single buffered']
    #allocation6 [shape = 's32[1]{0}', space=sflag, size = 0x4, scoped, tag = 'scoped memory for tpu_custom_call.1']
    #allocation7 [shape = 'u8[65536]{0}', space=vmem, size = 0x10000, scoped, tag = 'input window, operand 2, single buffered']
    #allocation8 [shape = 'u8[8192]{0}', space=vmem, size = 0x2000, scoped, tag = 'input window, operand 3, single buffered']
    #allocation9 [shape = 's32[1]{0}', space=sflag, size = 0x4, scoped, tag = 'scoped memory for tpu_custom_call.1']
    #allocation10 [shape = 'u8[65536]{0}', space=vmem, size = 0x10000, scoped, tag = 'input window, operand 4, single buffered']
    #allocation11 [shape = 'u8[4096]{0}', space=vmem, size = 0x1000, scoped, tag = 'output window, operand 0, single buffered']
    %10 = vsyncpa [#allocation3], 0
    %11 = vsyncpa [#allocation6], 0
    %12 = vsyncpa [#allocation9], 0
    %13 = vsyncpa [#allocation4], 0
    // Predicated region
    $region2: #{tpu_custom_call.1} parent=1 // pred_check
      _
    $region3: #{tpu_custom_call.1} parent=1 // pred_check_branch
      %15 = sbr.rel (0) target = $region5
    $region4: #{tpu_custom_call.1} parent=1 // pred_region
      %17 = vsyncadd [#allocation3], 0
      %s19 = sshll.u32 %s0, 4
      %s20 = int_to_ptr.hbm [resolvable:$true] %s19
      %s21 = sshll.u32 [#allocation2], 4
      %s22 = int_to_ptr.vmem [resolvable:$true] %s21
      %24 = dma.hbm_to_vmem [thread:$0]  %s20, 128, %s22, [#allocation3]
    $region5: #{tpu_custom_call.1} parent=1 // pred_fallthru
      _
    // Predicated region
    $region6: #{tpu_custom_call.1} parent=1 // pred_check
      _
    $region7: #{tpu_custom_call.1} parent=1 // pred_check_branch
      %26 = sbr.rel (0) target = $region9
    $region8: #{tpu_custom_call.1} parent=1 // pred_region
      %28 = vsyncadd [#allocation6], 0
      %s29 = sshll.u32 %s1, 4
      %s30 = int_to_ptr.hbm [resolvable:$true] %s29
      %s31 = sshll.u32 [#allocation5], 4
      %s32 = int_to_ptr.vmem [resolvable:$true] %s31
      %37 = dma.hbm_to_vmem [thread:$0]  %s30, 256, %s32, [#allocation6], 128, 128, 8
    $region9: #{tpu_custom_call.1} parent=1 // pred_fallthru
      _
    // Predicated region
    $region10: #{tpu_custom_call.1} parent=1 // pred_check
      _
    $region11: #{tpu_custom_call.1} parent=1 // pred_check_branch
      %39 = sbr.rel (0) target = $region13
    $region12: #{tpu_custom_call.1} parent=1 // pred_region
      %41 = vsyncadd [#allocation6], 0
      %s42 = sshll.u32 %s2, 4
      %s43 = int_to_ptr.hbm [resolvable:$true] %s42
      %s44 = sshll.u32 [#allocation7], 4
      %s45 = int_to_ptr.vmem [resolvable:$true] %s44
      %50 = dma.hbm_to_vmem [thread:$0]  %s43, 2048, %s45, [#allocation6], 128, 128, 8
    $region13: #{tpu_custom_call.1} parent=1 // pred_fallthru
      _
    // Predicated region
    $region14: #{tpu_custom_call.1} parent=1 // pred_check
      _
    $region15: #{tpu_custom_call.1} parent=1 // pred_check_branch
      %52 = sbr.rel (0) target = $region17
    $region16: #{tpu_custom_call.1} parent=1 // pred_region
      %54 = vsyncadd [#allocation9], 0
      %s55 = sshll.u32 %s3, 4
      %s56 = int_to_ptr.hbm [resolvable:$true] %s55
      %s57 = sshll.u32 [#allocation8], 4
      %s58 = int_to_ptr.vmem [resolvable:$true] %s57
      %63 = dma.hbm_to_vmem [thread:$0]  %s56, 256, %s58, [#allocation9], 128, 128, 8
    $region17: #{tpu_custom_call.1} parent=1 // pred_fallthru
      _
    // Predicated region
    $region18: #{tpu_custom_call.1} parent=1 // pred_check
      _
    $region19: #{tpu_custom_call.1} parent=1 // pred_check_branch
      %65 = sbr.rel (0) target = $region21
    $region20: #{tpu_custom_call.1} parent=1 // pred_region
      %67 = vsyncadd [#allocation9], 0
      %s68 = sshll.u32 %s4, 4
      %s69 = int_to_ptr.hbm [resolvable:$true] %s68
      %s70 = sshll.u32 [#allocation10], 4
      %s71 = int_to_ptr.vmem [resolvable:$true] %s70
      %76 = dma.hbm_to_vmem [thread:$0]  %s69, 2048, %s71, [#allocation9], 128, 128, 8
    $region21: #{tpu_custom_call.1} parent=1 // pred_fallthru
      _
    // Predicated region
    $region22: #{tpu_custom_call.1} parent=1 // pred_check
      _
    $region23: #{tpu_custom_call.1} parent=1 // pred_check_branch
      %78 = sbr.rel (0) target = $region25
    $region24: #{tpu_custom_call.1} parent=1 // pred_region
      %80 = dma.done [#allocation3], 128
    $region25: #{tpu_custom_call.1} parent=1 // pred_fallthru
      _
    // Predicated region
    $region26: #{tpu_custom_call.1} parent=1 // pred_check
      _
    $region27: #{tpu_custom_call.1} parent=1 // pred_check_branch
      %82 = sbr.rel (0) target = $region29
    $region28: #{tpu_custom_call.1} parent=1 // pred_region
      %84 = dma.done [#allocation6], 256
    $region29: #{tpu_custom_call.1} parent=1 // pred_fallthru
      _
    // Predicated region
    $region30: #{tpu_custom_call.1} parent=1 // pred_check
      _
    $region31: #{tpu_custom_call.1} parent=1 // pred_check_branch
      %86 = sbr.rel (0) target = $region33
    $region32: #{tpu_custom_call.1} parent=1 // pred_region
      %88 = dma.done [#allocation6], 2048
    $region33: #{tpu_custom_call.1} parent=1 // pred_fallthru
      _
    // Predicated region
    $region34: #{tpu_custom_call.1} parent=1 // pred_check
      _
    $region35: #{tpu_custom_call.1} parent=1 // pred_check_branch
      %90 = sbr.rel (0) target = $region37
    $region36: #{tpu_custom_call.1} parent=1 // pred_region
      %92 = dma.done [#allocation9], 256
    $region37: #{tpu_custom_call.1} parent=1 // pred_fallthru
      _
    // Predicated region
    $region38: #{tpu_custom_call.1} parent=1 // pred_check
      _
    $region39: #{tpu_custom_call.1} parent=1 // pred_check_branch
      %94 = sbr.rel (0) target = $region41
    $region40: #{tpu_custom_call.1} parent=1 // pred_region
      %96 = dma.done [#allocation9], 2048
    $region41: #{tpu_custom_call.1} parent=1 // pred_fallthru
      _
    %v97 = vld [vmem:[#allocation2] sm:$0xff]
    %v98 = vld [vmem:[#allocation5] sm:$0xff]
    %v99 = vld [vmem:[#allocation5 + $0x8] sm:$0xff]
    %vm100 = vcmask 130048
    %v102 = vsel %vm100, %v97, 0
    %104 = vmatpush.msra.mxu0 0.0
    %105 = vmatpush.msra.mxu0 0.0
    %106 = vmatpush.msra.mxu0 0.0
    %107 = vmatpush.msra.mxu0 0.0
    %108 = vmatpush.msra.mxu0 0.0
    %109 = vmatpush.msra.mxu0 0.0
    %110 = vmatpush.msra.mxu0 0.0
    %111 = vmatpush.msra.mxu0 0.0
    %112 = vmatpush.msra.mxu0 0.0
    %113 = vmatpush.msra.mxu0 0.0
    %114 = vmatpush.msra.mxu0 0.0
    %115 = vmatpush.msra.mxu0 0.0
    %116 = vmatpush.msra.mxu0 0.0
    %117 = vmatpush.msra.mxu0 0.0
    %118 = vmatpush.msra.mxu0 %v99
    %119 = vmatpush.msra.mxu0 %v98
    %120 = vmatmul.f32.gmra.mxu0 %v102
    %v121 = vpop.f32.mrf.mxu0
    %v122 = vadd.f32 0.0, %v121
    %123 = vdwg.mxu0
    %v124 = vmax.f32 %v122, 0.0
    %v125 = vld [vmem:[#allocation7] sm:$0xff]
    %v126 = vld [vmem:[#allocation7 + $0x8] sm:$0xff]
    %v127 = vld [vmem:[#allocation7 + $0x10] sm:$0xff]
    %v128 = vld [vmem:[#allocation7 + $0x18] sm:$0xff]
    %v129 = vld [vmem:[#allocation7 + $0x20] sm:$0xff]
    %v130 = vld [vmem:[#allocation7 + $0x28] sm:$0xff]
    %v131 = vld [vmem:[#allocation7 + $0x30] sm:$0xff]
    %v132 = vld [vmem:[#allocation7 + $0x38] sm:$0xff]
    %v133 = vld [vmem:[#allocation7 + $0x40] sm:$0xff]
    %v134 = vld [vmem:[#allocation7 + $0x48] sm:$0xff]
    %v135 = vld [vmem:[#allocation7 + $0x50] sm:$0xff]
    %v136 = vld [vmem:[#allocation7 + $0x58] sm:$0xff]
    %v137 = vld [vmem:[#allocation7 + $0x60] sm:$0xff]
    %v138 = vld [vmem:[#allocation7 + $0x68] sm:$0xff]
    %v139 = vld [vmem:[#allocation7 + $0x70] sm:$0xff]
    %v140 = vld [vmem:[#allocation7 + $0x78] sm:$0xff]
    %141 = vmatpush.msra.mxu0 %v140
    %142 = vmatpush.msra.mxu0 %v139
    %143 = vmatpush.msra.mxu0 %v138
    %144 = vmatpush.msra.mxu0 %v137
    %145 = vmatpush.msra.mxu0 %v136
    %146 = vmatpush.msra.mxu0 %v135
    %147 = vmatpush.msra.mxu0 %v134
    %148 = vmatpush.msra.mxu0 %v133
    %149 = vmatpush.msra.mxu0 %v132
    %150 = vmatpush.msra.mxu0 %v131
    %151 = vmatpush.msra.mxu0 %v130
    %152 = vmatpush.msra.mxu0 %v129
    %153 = vmatpush.msra.mxu0 %v128
    %154 = vmatpush.msra.mxu0 %v127
    %155 = vmatpush.msra.mxu0 %v126
    %156 = vmatpush.msra.mxu0 %v125
    %157 = vmatmul.f32.gmra.mxu0 %v124
    %v158 = vpop.f32.mrf.mxu0
    %v159 = vadd.f32 0.0, %v158
    %160 = vdwg.mxu0
    %v161 = vmax.f32 %v159, 0.0
    %v162 = vld [vmem:[#allocation8] sm:$0xff]
    %v163 = vld [vmem:[#allocation8 + $0x8] sm:$0xff]
    %v164 = vld [vmem:[#allocation10] sm:$0xff]
    %v165 = vld [vmem:[#allocation10 + $0x8] sm:$0xff]
    %v166 = vld [vmem:[#allocation10 + $0x10] sm:$0xff]
    %v167 = vld [vmem:[#allocation10 + $0x18] sm:$0xff]
    %v168 = vld [vmem:[#allocation10 + $0x20] sm:$0xff]
    %v169 = vld [vmem:[#allocation10 + $0x28] sm:$0xff]
    %v170 = vld [vmem:[#allocation10 + $0x30] sm:$0xff]
    %v171 = vld [vmem:[#allocation10 + $0x38] sm:$0xff]
    %v172 = vld [vmem:[#allocation10 + $0x40] sm:$0xff]
    %v173 = vld [vmem:[#allocation10 + $0x48] sm:$0xff]
    %v174 = vld [vmem:[#allocation10 + $0x50] sm:$0xff]
    %v175 = vld [vmem:[#allocation10 + $0x58] sm:$0xff]
    %v176 = vld [vmem:[#allocation10 + $0x60] sm:$0xff]
    %v177 = vld [vmem:[#allocation10 + $0x68] sm:$0xff]
    %v178 = vld [vmem:[#allocation10 + $0x70] sm:$0xff]
    %v179 = vld [vmem:[#allocation10 + $0x78] sm:$0xff]
    %180 = vmatpush.msra.mxu0 %v179
    %181 = vmatpush.msra.mxu0 %v178
    %182 = vmatpush.msra.mxu0 %v177
    %183 = vmatpush.msra.mxu0 %v176
    %184 = vmatpush.msra.mxu0 %v175
    %185 = vmatpush.msra.mxu0 %v174
    %186 = vmatpush.msra.mxu0 %v173
    %187 = vmatpush.msra.mxu0 %v172
    %188 = vmatpush.msra.mxu0 %v171
    %189 = vmatpush.msra.mxu0 %v170
    %190 = vmatpush.msra.mxu0 %v169
    %191 = vmatpush.msra.mxu0 %v168
    %192 = vmatpush.msra.mxu0 %v167
    %193 = vmatpush.msra.mxu0 %v166
    %194 = vmatpush.msra.mxu0 %v165
    %195 = vmatpush.msra.mxu0 %v164
    %196 = vmatmul.f32.gmra.mxu0 %v161
    %v197 = vpop.f32.mrf.mxu0
    %v198 = vadd.f32 0.0, %v197
    %199 = vdwg.mxu0
    %200 = vmatpush.msra.mxu0 0.0
    %201 = vmatpush.msra.mxu0 0.0
    %202 = vmatpush.msra.mxu0 0.0
    %203 = vmatpush.msra.mxu0 0.0
    %204 = vmatpush.msra.mxu0 0.0
    %205 = vmatpush.msra.mxu0 0.0
    %206 = vmatpush.msra.mxu0 0.0
    %207 = vmatpush.msra.mxu0 0.0
    %208 = vmatpush.msra.mxu0 0.0
    %209 = vmatpush.msra.mxu0 0.0
    %210 = vmatpush.msra.mxu0 0.0
    %211 = vmatpush.msra.mxu0 0.0
    %212 = vmatpush.msra.mxu0 0.0
    %213 = vmatpush.msra.mxu0 0.0
    %214 = vmatpush.msra.mxu0 %v163
    %215 = vmatpush.msra.mxu0 %v162
    %216 = vmatmul.f32.gmra.mxu0 %v102
    %v217 = vpop.f32.mrf.mxu0
    %v218 = vadd.f32 %v198, %v217
    %219 = vdwg.mxu0
    %220 = vst [vmem:[#allocation11] sm:$0xff] %v218
    // Predicated region
    $region42: #{tpu_custom_call.1} parent=1 // pred_check
      _
    $region43: #{tpu_custom_call.1} parent=1 // pred_check_branch
      %222 = sbr.rel (0) target = $region45
    $region44: #{tpu_custom_call.1} parent=1 // pred_region
      %224 = vsyncadd [#allocation4], 0
      %s226 = sshll.u32 [#allocation11], 4
      %s227 = int_to_ptr.vmem [resolvable:$true] %s226
      %s228 = sshll.u32 %s5, 4
      %s229 = int_to_ptr.hbm [resolvable:$true] %s228
      %231 = dma.vmem_to_hbm [thread:$0]  %s227, 128, %s229, [#allocation4]
    $region45: #{tpu_custom_call.1} parent=1 // pred_fallthru
      _
    // Predicated region
    $region46: #{tpu_custom_call.1} parent=1 // pred_check
      _
    $region47: #{tpu_custom_call.1} parent=1 // pred_check_branch
      %233 = sbr.rel (0) target = $region49
    $region48: #{tpu_custom_call.1} parent=1 // pred_region
      %235 = dma.done [#allocation4], 128
    $region49: #{tpu_custom_call.1} parent=1 // pred_fallthru
      _
    %236 = vsyncpa [#allocation3], 1
    %237 = vsyncpa [#allocation6], 1
    %238 = vsyncpa [#allocation9], 1
    %239 = vsyncpa [#allocation4], 1

</llo_original>
